<compile_context>
chip_gen: v5e
topology: v5e:2x2
jax: 0.10.0
libtpu: 0.0.40
codegen_flags: <defaults>
</compile_context>

<pallas_src>
import math
from typing import Optional

import jax
import jax.numpy as jnp
from jax.experimental import pallas as pl
from jax.experimental.pallas import tpu as pltpu


_MAX_ROW_TILE = 1024  # measured tiled-add sweep: 512 rows ~85%, 1024 ~86% of HBM roofline


def _physical_vmem_bytes() -> int:
    """Per-core physical VMEM; conservative fallback if the query is unavailable."""
    try:
        return int(pltpu.get_tpu_info().vmem_capacity_bytes)
    except Exception:
        return 64 << 20  # v7x-sized part (smallest of v5e/v6e/v7x)


def _add_pe_flat_kernel(tok_ref, pe_ref, out_ref):
    # tok_ref / out_ref: (TR, TF) lane-dense tiles; pe_ref: (TR, TF) f32 table.
    # Compute in f32 (matches the PyTorch f32 PE-buffer promotion), cast on store.
    acc = tok_ref[...].astype(jnp.float32) + pe_ref[...].astype(jnp.float32)
    out_ref[...] = acc.astype(out_ref.dtype)


def _add_pe_bcast_kernel(tok_ref, pe_ref, out_ref):
    # tok_ref / out_ref: (TR, N, TD); pe_ref: (TR, TD), broadcast over slots in-kernel.
    tok = tok_ref[...].astype(jnp.float32)
    pe = pe_ref[...].astype(jnp.float32)
    out_ref[...] = (tok + pe[:, None, :]).astype(out_ref.dtype)


def _choose_tiles(S: int, F: int, bytes_per_row_per_felem: int, budget: int):
    """Pick (row_tile, feat_tile).

    row tile: multiple of 8 (or == S); feat tile: multiple of 128 (or == F).
    `bytes_per_row_per_felem` already includes the double-buffer factor for all
    streams (tokens in, out, PE)."""
    feat_tile = F

    def max_rows(tf):
        return budget // max(1, tf * bytes_per_row_per_felem)

    if max_rows(feat_tile) < 8 and F > 128:
        # Feature-axis tiling (128-lane multiples) instead of collapsing rows
        # below a sublane tile / overflowing the scoped-VMEM limit.
        tf = (budget // (8 * bytes_per_row_per_felem)) // 128 * 128
        feat_tile = int(max(128, min(F, tf)))

    tr = int(min(S, _MAX_ROW_TILE, max(8, (max_rows(feat_tile) // 8) * 8)))
    if tr < S:
        tr = max(8, (tr // 8) * 8)
    else:
        tr = S
    return tr, feat_tile


def _ensure_two_grid_steps(S: int, tr: int, F: int, tf: int, B: int):
    """v7x has 2 TensorCores/chip: make sure the grid has >= 2 steps along a
    parallel axis so one core isn't left idle."""
    steps = pl.cdiv(S, tr) * pl.cdiv(F, tf) * B
    if steps >= 2:
        return tr, tf
    if S > 8:
        half = max(8, (((S + 1) // 2) + 7) // 8 * 8)
        if half < S:
            return half, tf
    if tf == F and F >= 256:
        return tr, ((F // 2 + 127) // 128) * 128
    return tr, tf


def add_positional_encoding(
    tokens: jax.Array,
    positional_encoding: jax.Array,
    precomputed_pe_tiled: Optional[jax.Array] = None,
) -> jax.Array:
    """tokens: [B, S, N, D]; positional_encoding: [max_seq_len, D] -> [B, S, N, D].

    Output dtype follows JAX promotion of (tokens, PE) — matches the PyTorch
    module, whose PE buffer is f32.

    `precomputed_pe_tiled` (optional, shape [>=S, N*D]): callers with a fixed
    (S, N, D) can hoist the lane-dense PE tiling out of the per-call path
    (only used on the D % 128 != 0 path)."""
    B, S, N, D = tokens.shape
    max_seq_len, pe_dim = positional_encoding.shape
    if S > max_seq_len:
        raise ValueError(f"Expected sequence length <= {max_seq_len}, but got {S}.")
    if D != pe_dim:
        raise ValueError(f"Expected token_dim to be {pe_dim}, but got {D}.")

    out_dtype = jnp.result_type(tokens.dtype, positional_encoding.dtype)
    tok_isz = jnp.dtype(tokens.dtype).itemsize
    out_isz = jnp.dtype(out_dtype).itemsize
    pe_isz = jnp.dtype(positional_encoding.dtype).itemsize

    phys_vmem = _physical_vmem_bytes()
    # Budget for the double-buffered (in, out, PE) tiles; generation-aware and
    # backed by an explicit vmem_limit_bytes below.
    budget = min(int(phys_vmem * 0.45), 96 << 20)

    if D % 128 == 0:
        # ---- Path A: D lane-aligned. Native (B,S,N,D) blocks; PE stays (S, D)
        # (no jnp.tile -> PE HBM traffic shrinks by N x) and is broadcast over
        # slots inside the kernel (VPU slack is ample; kernel is mem-bound).
        bytes_per_row = 2 * (N * (tok_isz + out_isz) + pe_isz)  # per D element
        TR, TD = _choose_tiles(S, D, bytes_per_row, budget)
        TR, TD = _ensure_two_grid_steps(S, TR, D, TD, B)
        used = TR * TD * bytes_per_row
        vmem_limit = int(min(phys_vmem - (8 << 20), max(used + (4 << 20), 16 << 20)))
        # Batch innermost: the PE block index is constant across the inner
        # loop, so its copy-in is skipped on all but the first inner step.
        grid = (pl.cdiv(S, TR), pl.cdiv(D, TD), B)
        out = pl.pallas_call(
            _add_pe_bcast_kernel,
            out_shape=jax.ShapeDtypeStruct((B, S, N, D), out_dtype),
            grid_spec=pltpu.PrefetchScalarGridSpec(
                num_scalar_prefetch=0,
                grid=grid,
                in_specs=[
                    pl.BlockSpec((pl.Squeezed(), TR, N, TD), lambda s, f, b: (b, s, 0, f)),
                    pl.BlockSpec((TR, TD), lambda s, f, b: (s, f)),
                ],
                out_specs=pl.BlockSpec((pl.Squeezed(), TR, N, TD), lambda s, f, b: (b, s, 0, f)),
            ),
            compiler_params=pltpu.CompilerParams(
                dimension_semantics=("parallel", "parallel", "parallel"),
                vmem_limit_bytes=vmem_limit,
            ),
        )(tokens, positional_encoding[:S])
        return out

    # ---- Path B: D not lane-aligned (e.g. D < 128). Flatten (N, D) -> F so
    # stores are lane-dense / unmasked; PE is pre-tiled to (S, F) once in the
    # wrapper (hoistable via `precomputed_pe_tiled`).
    F = N * D
    tokens_flat = tokens.reshape(B, S, F)
    if precomputed_pe_tiled is not None:
        pe_tiled = precomputed_pe_tiled[:S]
    else:
        pe_tiled = jnp.tile(positional_encoding[:S], (1, N))  # (S, F), kept f32

    bytes_per_row = 2 * (tok_isz + out_isz + pe_isz)  # per F element
    TR, TF = _choose_tiles(S, F, bytes_per_row, budget)
    TR, TF = _ensure_two_grid_steps(S, TR, F, TF, B)
    used = TR * TF * bytes_per_row
    vmem_limit = int(min(phys_vmem - (8 << 20), max(used + (4 << 20), 16 << 20)))
    grid = (pl.cdiv(S, TR), pl.cdiv(F, TF), B)  # batch innermost -> PE stays resident

    out_flat = pl.pallas_call(
        _add_pe_flat_kernel,
        out_shape=jax.ShapeDtypeStruct((B, S, F), out_dtype),
        grid_spec=pltpu.PrefetchScalarGridSpec(
            num_scalar_prefetch=0,
            grid=grid,
            in_specs=[
                pl.BlockSpec((pl.Squeezed(), TR, TF), lambda s, f, b: (b, s, f)),
                pl.BlockSpec((TR, TF), lambda s, f, b: (s, f)),
            ],
            out_specs=pl.BlockSpec((pl.Squeezed(), TR, TF), lambda s, f, b: (b, s, f)),
        ),
        compiler_params=pltpu.CompilerParams(
            dimension_semantics=("parallel", "parallel", "parallel"),
            vmem_limit_bytes=vmem_limit,
        ),
    )(tokens_flat, pe_tiled)
    return out_flat.reshape(B, S, N, D)


def make_sinusoidal_positional_encoding(max_sequence_length: int, token_dim: int) -> jax.Array:
    """Deterministic init for self.positional_encoding
    (classic sinusoidal table of shape (max_sequence_length, token_dim))."""
    position = jnp.arange(max_sequence_length, dtype=jnp.float32)[:, None]      # (L, 1)
    div_term = jnp.exp(
        jnp.arange(0, token_dim, 2, dtype=jnp.float32) * (-math.log(10000.0) / token_dim)
    )                                                                            # (D/2,)
    pe = jnp.zeros((max_sequence_length, token_dim), dtype=jnp.float32)
    pe = pe.at[:, 0::2].set(jnp.sin(position * div_term))
    pe = pe.at[:, 1::2].set(jnp.cos(position * div_term))
    return pe


if __name__ == "__main__":
    key = jax.random.PRNGKey(0)
    k1, k2, k3 = jax.random.split(key, 3)

    # Case 1: D < 128 -> lane-dense flattened path (F = N*D = 128).
    B, S, N, D = 2, 8, 4, 32
    max_L = 16
    tokens = jax.random.normal(k1, (B, S, N, D), dtype=jnp.float32)
    pe = make_sinusoidal_positional_encoding(max_L, D)
    out = jax.block_until_ready(add_positional_encoding(tokens, pe))
    ref = tokens + pe[:S][None, :, None, :]
    assert out.shape == tokens.shape and out.dtype == ref.dtype
    assert jnp.allclose(out, ref, atol=1e-6), "mismatch vs reference (flat path)"

    # Case 2: D multiple of 128 -> native-layout broadcast path (no PE tiling).
    B2, S2, N2, D2 = 2, 8, 2, 128
    tokens2 = jax.random.normal(k2, (B2, S2, N2, D2), dtype=jnp.float32)
    pe2 = make_sinusoidal_positional_encoding(16, D2)
    out2 = jax.block_until_ready(add_positional_encoding(tokens2, pe2))
    ref2 = tokens2 + pe2[:S2][None, :, None, :]
    assert out2.shape == tokens2.shape
    assert jnp.allclose(out2, ref2, atol=1e-6), "mismatch vs reference (broadcast path)"

    # Case 3: bf16 tokens -- the add is performed in f32 and the result is
    # promoted to f32, matching the PyTorch f32 PE buffer behavior.
    tokens3 = jax.random.normal(k3, (B, S, N, D), dtype=jnp.float32).astype(jnp.bfloat16)
    out3 = jax.block_until_ready(add_positional_encoding(tokens3, pe))
    ref3 = tokens3.astype(jnp.float32) + pe[:S][None, :, None, :]
    assert out3.dtype == jnp.float32
    assert jnp.allclose(out3, ref3, atol=1e-6), "mismatch vs reference (bf16 path)"

    print("KERNEL_OK")
</pallas_src>

<mosaic_0001>
module attributes {stable_mosaic.version = 11 : i64} {
  func.func @_add_pe_flat_kernel(%arg0: i32, %arg1: i32, %arg2: i32, %arg3: memref<1x8x128xf32, #tpu.memory_space<vmem>>, %arg4: memref<8x128xf32, #tpu.memory_space<vmem>>, %arg5: memref<1x8x128xf32, #tpu.memory_space<vmem>>) attributes {dimension_semantics = [#tpu.dimension_semantics<parallel>, #tpu.dimension_semantics<parallel>, #tpu.dimension_semantics<parallel>], iteration_bounds = array<i64: 1, 1, 2>, scalar_prefetch = 0 : i64, scratch_operands = 0 : i64, tpu.core_type = #tpu.core_type<tc>, window_params = [{transform_indices = @transform_0, window_bounds = array<i64: 1, 8, 128>}, {transform_indices = @transform_1, window_bounds = array<i64: 8, 128>}, {transform_indices = @transform_2, window_bounds = array<i64: 1, 8, 128>}]} {
    %c0 = arith.constant 0 : index
    %c0_0 = arith.constant 0 : index
    %c0_1 = arith.constant 0 : index
    %0 = vector.load %arg3[%c0, %c0_0, %c0_1] : memref<1x8x128xf32, #tpu.memory_space<vmem>>, vector<1x8x128xf32>
    %1 = vector.shape_cast %0 : vector<1x8x128xf32> to vector<8x128xf32>
    %c0_2 = arith.constant 0 : index
    %c0_3 = arith.constant 0 : index
    %2 = vector.load %arg4[%c0_2, %c0_3] : memref<8x128xf32, #tpu.memory_space<vmem>>, vector<8x128xf32>
    %3 = arith.addf %1, %2 : vector<8x128xf32>
    %c0_4 = arith.constant 0 : index
    %c0_5 = arith.constant 0 : index
    %c0_6 = arith.constant 0 : index
    %4 = vector.load %arg5[%c0_4, %c0_5, %c0_6] : memref<1x8x128xf32, #tpu.memory_space<vmem>>, vector<1x8x128xf32>
    %5 = vector.shape_cast %4 : vector<1x8x128xf32> to vector<8x128xf32>
    %6 = vector.shape_cast %3 : vector<8x128xf32> to vector<1x8x128xf32>
    tpu.vector_store %arg5[%c0_4, %c0_5, %c0_6], %6 {strides = array<i32>} : memref<1x8x128xf32, #tpu.memory_space<vmem>>, vector<1x8x128xf32>,
    return
  }
  func.func @transform_0(%arg0: i32, %arg1: i32, %arg2: i32) -> (i32, i32, i32) {
    %c0_i32 = arith.constant 0 : i32
    return %arg2, %arg0, %arg1 : i32, i32, i32
  }
  func.func @transform_1(%arg0: i32, %arg1: i32, %arg2: i32) -> (i32, i32) {
    %c0_i32 = arith.constant 0 : i32
    return %arg0, %arg1 : i32, i32
  }
  func.func @transform_2(%arg0: i32, %arg1: i32, %arg2: i32) -> (i32, i32, i32) {
    %c0_i32 = arith.constant 0 : i32
    return %arg2, %arg0, %arg1 : i32, i32, i32
  }
}

</mosaic_0001>

<llo_original>
// kernel: tpu_custom_call.1
$region0: #{tpu_custom_call.1}
  #allocation0 [shape = 'u32[]', space=smem, size = 0x4, offset = 0x4, fixed_abs, tag = 'smem constant byte address 0x4 - core index']
  #allocation1 [shape = 'u32[72,128]{1,0:T(1,128)}', space=vmem, size = 0x9000, scoped, tag = 'internal scratch']
  %s0 = inlined_call_operand.hbm [shape: f32[2,8,128], index: 0, kind: input, shape index: {}]
  %s1 = inlined_call_operand.hbm [shape: f32[8,128], index: 1, kind: input, shape index: {}]
  %s2 = inlined_call_operand.hbm [shape: f32[2,8,128], index: 2, kind: output, shape index: {}]
  %s3 = sld [smem:[#allocation0]]
  $region49: #{tpu_custom_call.1} parent=0
    _
  %s5 = ssub.s32 1, %s3
  %s6 = scalar_select 0, %s5, %s3
  $region1: #{tpu_custom_call.1} parent=0
    #allocation2 [shape = 'u8[8192]{0}', space=vmem, size = 0x2000, scoped, tag = 'input window, operand 0']
    #allocation3 [shape = 's32[2]{0}', space=sflag, size = 0x8, scoped, tag = 'scoped memory for tpu_custom_call.1']
    #allocation4 [shape = 's32[2]{0}', space=sflag, size = 0x8, scoped, tag = 'scoped memory for tpu_custom_call.1']
    #allocation5 [shape = 'u8[4096]{0}', space=vmem, size = 0x1000, scoped, tag = 'input window, operand 1, single buffered']
    #allocation6 [shape = 's32[1]{0}', space=sflag, size = 0x4, scoped, tag = 'scoped memory for tpu_custom_call.1']
    #allocation7 [shape = 'u8[8192]{0}', space=vmem, size = 0x2000, scoped, tag = 'output window, operand 0']
    %7 = vsyncpa [#allocation3], 0
    %s8 = scalar_lea.sflag [#allocation3], 1
    %9 = vsyncpa %s8, 0
    %10 = vsyncpa [#allocation6], 0
    %11 = vsyncpa [#allocation4], 0
    %s12 = scalar_lea.sflag [#allocation4], 1
    %13 = vsyncpa %s12, 0
    loop: start=0, step=1, limit=4
    $region2: #{tpu_custom_call.1} parent=1 // loop_pre_header
      _
    $region3: #{tpu_custom_call.1} parent=1 // loop_header
      %s15 = sphi 0, %s19
      %p16 = scmp.ge.s32.totalorder %s15, 4
      %s22 = sphi 0, %s41
      %s23 = sphi 0, %s37
      %s24 = sphi 0, %s33
      %s25 = sphi 0, %s22
      %s26 = sphi 0, %s23
      %s27 = sphi 0, %s24
      %s28 = sphi 0, %s25
      %s29 = sphi 0, %s26
      %s30 = sphi 0, %s27
      %s48 = sphi 0, %s50
      %s51 = sphi 0, %s48
      %s52 = sphi 0, %s51
      %s68 = sphi 0, %s52
      %s76 = sphi 0, %s78
      %s79 = sphi 0, %s76
      %s80 = sphi 0, %s79
      %s96 = sphi 0, %s80
      %s106 = sphi 0, %s108
      %s109 = sphi 0, %s106
      %s110 = sphi 0, %s109
      %s126 = sphi 0, %s110
    $region4: #{tpu_custom_call.1} parent=1 // loop_header_branch
      %18 = sbr.rel (%p16) target = $region8
    $region5: #{tpu_custom_call.1} parent=1 // loop_body
      %s20 = ssub.s32 %s15, 1
      %s21 = ssub.s32 %s15, 2
      %s31 = sadd.s32 1, %s24
      %p32 = scmp.ge.s32.totalorder %s31, 2
      %s33 = scalar_select %p32, 0, %s31
      %s34 = sadd.s32 1, %s23
      %s35 = scalar_select %p32, %s34, %s23
      %p36 = scmp.ge.s32.totalorder %s35, 1
      %s37 = scalar_select %p36, 0, %s35
      %s38 = sadd.s32 1, %s22
      %s39 = scalar_select %p36, %s38, %s22
      %p40 = scmp.ge.s32.totalorder %s39, 1
      %s41 = scalar_select %p40, 0, %s39
      %s42 = ssub.s32 %s24, %s33
      %s43 = ssub.s32 %s22, %s41
      %s44 = sor.u32 %s42, %s43
      %s45 = ssub.s32 %s23, %s37
      %s46 = sor.u32 %s44, %s45
      %p47 = scmp.eq.s32.totalorder %s46, 0
      %s49 = sadd.s32 %s48, 1
      %s50 = scalar_select %p47, %s48, %s49
      %p53 = pneg %p47
      %p54 = scmp.eq.s32.totalorder %s15, 1
      %p55 = por %p53, %p54
      %p56 = scmp.ne.s32.totalorder %s48, %s51
      %p57 = scmp.eq.s32.totalorder %s15, 0
      %p58 = por %p56, %p57
      %p59 = scmp.ne.s32.totalorder %s48, %s51
      %p60 = scmp.eq.s32.totalorder %s20, 1
      %p61 = por %p59, %p60
      %p62 = scmp.ne.s32.totalorder %s51, %s52
      %p63 = scmp.eq.s32.totalorder %s20, 0
      %p64 = por %p62, %p63
      %p65 = scmp.ne.s32.totalorder %s51, %s52
      %p66 = scmp.eq.s32.totalorder %s21, 1
      %p67 = por %p65, %p66
      %p69 = scmp.ne.s32.totalorder %s52, %s68
      %p70 = scmp.eq.s32.totalorder %s21, 0
      %p71 = por %p69, %p70
      %s72 = ssub.s32 %s22, %s41
      %s73 = ssub.s32 %s23, %s37
      %s74 = sor.u32 %s72, %s73
      %p75 = scmp.eq.s32.totalorder %s74, 0
      %s77 = sadd.s32 %s76, 1
      %s78 = scalar_select %p75, %s76, %s77
      %p81 = pneg %p75
      %p82 = scmp.eq.s32.totalorder %s15, 1
      %p83 = por %p81, %p82
      %p84 = scmp.ne.s32.totalorder %s76, %s79
      %p85 = scmp.eq.s32.totalorder %s15, 0
      %p86 = por %p84, %p85
      %p87 = scmp.ne.s32.totalorder %s76, %s79
      %p88 = scmp.eq.s32.totalorder %s20, 1
      %p89 = por %p87, %p88
      %p90 = scmp.ne.s32.totalorder %s79, %s80
      %p91 = scmp.eq.s32.totalorder %s20, 0
      %p92 = por %p90, %p91
      %p93 = scmp.ne.s32.totalorder %s79, %s80
      %p94 = scmp.eq.s32.totalorder %s21, 1
      %p95 = por %p93, %p94
      %p97 = scmp.ne.s32.totalorder %s80, %s96
      %p98 = scmp.eq.s32.totalorder %s21, 0
      %p99 = por %p97, %p98
      %s100 = ssub.s32 %s24, %s33
      %s101 = ssub.s32 %s22, %s41
      %s102 = sor.u32 %s100, %s101
      %s103 = ssub.s32 %s23, %s37
      %s104 = sor.u32 %s102, %s103
      %p105 = scmp.eq.s32.totalorder %s104, 0
      %s107 = sadd.s32 %s106, 1
      %s108 = scalar_select %p105, %s106, %s107
      %p111 = pneg %p105
      %p112 = scmp.eq.s32.totalorder %s15, 1
      %p113 = por %p111, %p112
      %p114 = scmp.ne.s32.totalorder %s106, %s109
      %p115 = scmp.eq.s32.totalorder %s15, 0
      %p116 = por %p114, %p115
      %p117 = scmp.ne.s32.totalorder %s106, %s109
      %p118 = scmp.eq.s32.totalorder %s20, 1
      %p119 = por %p117, %p118
      %p120 = scmp.ne.s32.totalorder %s109, %s110
      %p121 = scmp.eq.s32.totalorder %s20, 0
      %p122 = por %p120, %p121
      %p123 = scmp.ne.s32.totalorder %s109, %s110
      %p124 = scmp.eq.s32.totalorder %s21, 1
      %p125 = por %p123, %p124
      %p127 = scmp.ne.s32.totalorder %s110, %s126
      %p128 = scmp.eq.s32.totalorder %s21, 0
      %p129 = por %p127, %p128
      %p130 = scmp.le.s32.totalorder 1, %s15
      %p131 = scmp.lt.s32.totalorder %s15, 3
      %p132 = pnand %p130, %p131
      %p133 = pneg %p132
      // Predicated region
      $region9: #{tpu_custom_call.1} parent=5 // pred_check
        _
      $region10: #{tpu_custom_call.1} parent=5 // pred_check_branch
        %135 = sbr.rel (%p132) target = $region12
      $region11: #{tpu_custom_call.1} parent=5 // pred_region
        %s136 = ssub.s32 %s15, 1
        // Predicated region
        $region13: #{tpu_custom_call.1} parent=11 // pred_check
          %p137 = pneg %p92
        $region14: #{tpu_custom_call.1} parent=11 // pred_check_branch
          %139 = sbr.rel (%p137) target = $region16
        $region15: #{tpu_custom_call.1} parent=11 // pred_region
          %141 = vsyncadd [#allocation6], 0
          %s142 = sadd.s32 %s26, %s25
          %s143 = smul.addr %s142, 8
          %s144 = scalar_lea.hbm %s1, %s143
          %s146 = sshll.u32 %s144, 4
          %s147 = int_to_ptr.hbm [resolvable:$true] %s146
          %s148 = sshll.u32 [#allocation5], 4
          %s149 = int_to_ptr.vmem [resolvable:$true] %s148
          %151 = dma.hbm_to_vmem [thread:$0]  %s147, 128, %s149, [#allocation6]
        $region16: #{tpu_custom_call.1} parent=11 // pred_fallthru
          _
      $region12: #{tpu_custom_call.1} parent=5 // pred_fallthru
        _
      %p152 = scmp.lt.s32.totalorder %s15, 2
      // Predicated region
      $region17: #{tpu_custom_call.1} parent=5 // pred_check
        %p153 = pneg %p152
      $region18: #{tpu_custom_call.1} parent=5 // pred_check_branch
        %155 = sbr.rel (%p153) target = $region20
      $region19: #{tpu_custom_call.1} parent=5 // pred_region
        // Predicated region
        $region21: #{tpu_custom_call.1} parent=19 // pred_check
          %p156 = pneg %p58
        $region22: #{tpu_custom_call.1} parent=19 // pred_check_branch
          %158 = sbr.rel (%p156) target = $region24
        $region23: #{tpu_custom_call.1} parent=19 // pred_region
          %s159 = sand.u32 %s48, 1
          %s160 = scalar_lea.sflag [#allocation3], %s159
          %s161 = sand.u32 %s48, 1
          %s162 = smul.addr %s161, 8
          %s163 = scalar_lea.vmem [#allocation2], %s162
          %165 = vsyncadd %s160, 0
          %s166 = sadd.s32 %s23, %s22
          %s167 = sadd.s32 %s166, %s24
          %s168 = smul.addr %s167, 8
          %s169 = scalar_lea.hbm %s0, %s168
          %s171 = sshll.u32 %s169, 4
          %s172 = int_to_ptr.hbm [resolvable:$true] %s171
          %s173 = sshll.u32 %s163, 4
          %s174 = int_to_ptr.vmem [resolvable:$true] %s173
          %176 = dma.hbm_to_vmem [thread:$0]  %s172, 128, %s174, %s160
        $region24: #{tpu_custom_call.1} parent=19 // pred_fallthru
          _
      $region20: #{tpu_custom_call.1} parent=5 // pred_fallthru
        _
      %p177 = scmp.le.s32.totalorder 1, %s15
      %p178 = scmp.lt.s32.totalorder %s15, 3
      %p179 = pnand %p177, %p178
      %p180 = pneg %p179
      // Predicated region
      $region25: #{tpu_custom_call.1} parent=5 // pred_check
        _
      $region26: #{tpu_custom_call.1} parent=5 // pred_check_branch
        %182 = sbr.rel (%p179) target = $region28
      $region27: #{tpu_custom_call.1} parent=5 // pred_region
        %s183 = ssub.s32 %s15, 1
        %s184 = sand.u32 %s51, 1
        %s185 = scalar_lea.sflag [#allocation3], %s184
        %s186 = sand.u32 %s51, 1
        %s187 = smul.addr %s186, 8
        %s188 = scalar_lea.vmem [#allocation2], %s187
        // Predicated region
        $region29: #{tpu_custom_call.1} parent=27 // pred_check
          %p189 = pneg %p64
        $region30: #{tpu_custom_call.1} parent=27 // pred_check_branch
          %191 = sbr.rel (%p189) target = $region32
        $region31: #{tpu_custom_call.1} parent=27 // pred_region
          %193 = dma.done %s185, 128
        $region32: #{tpu_custom_call.1} parent=27 // pred_fallthru
          _
        // Predicated region
        $region33: #{tpu_custom_call.1} parent=27 // pred_check
          %p194 = pneg %p92
        $region34: #{tpu_custom_call.1} parent=27 // pred_check_branch
          %196 = sbr.rel (%p194) target = $region36
        $region35: #{tpu_custom_call.1} parent=27 // pred_region
          %198 = dma.done [#allocation6], 128
        $region36: #{tpu_custom_call.1} parent=27 // pred_fallthru
          _
        %s199 = sand.u32 %s51, 1
        %s200 = scalar_lea.sflag [#allocation3], %s199
        %s201 = sand.u32 %s51, 1
        %s202 = smul.addr %s201, 8
        %s203 = scalar_lea.vmem [#allocation2], %s202
        %p204 = pneg %p64
        %p205 = pneg %p61
        %p206 = pneg %p92
        %p207 = pneg %p89
        %p208 = pneg %p122
        %p209 = pneg %p119
        %s210 = sand.u32 %s109, 1
        %s211 = scalar_lea.sflag [#allocation4], %s210
        %s212 = sand.u32 %s109, 1
        %s213 = smul.addr %s212, 8
        %s214 = scalar_lea.vmem [#allocation7], %s213
        %v215 = vld [vmem:[%s188] sm:$0xff]
        %v216 = vld [vmem:[#allocation5] sm:$0xff]
        %v217 = vadd.f32 %v215, %v216
        %218 = vst [vmem:[%s214] sm:$0xff] %v217
        %s219 = sand.u32 %s109, 1
        %s220 = scalar_lea.sflag [#allocation4], %s219
        %s221 = sand.u32 %s109, 1
        %s222 = smul.addr %s221, 8
        %s223 = scalar_lea.vmem [#allocation7], %s222
        // Predicated region
        $region37: #{tpu_custom_call.1} parent=27 // pred_check
          %p224 = pneg %p119
        $region38: #{tpu_custom_call.1} parent=27 // pred_check_branch
          %226 = sbr.rel (%p224) target = $region40
        $region39: #{tpu_custom_call.1} parent=27 // pred_region
          %228 = vsyncadd %s220, 0
          %s229 = sadd.s32 %s26, %s25
          %s230 = sadd.s32 %s229, %s27
          %s231 = smul.addr %s230, 8
          %s232 = scalar_lea.hbm %s2, %s231
          %s234 = sshll.u32 %s223, 4
          %s235 = int_to_ptr.vmem [resolvable:$true] %s234
          %s236 = sshll.u32 %s232, 4
          %s237 = int_to_ptr.hbm [resolvable:$true] %s236
          %239 = dma.vmem_to_hbm [thread:$0]  %s235, 128, %s237, %s220
        $region40: #{tpu_custom_call.1} parent=27 // pred_fallthru
          _
      $region28: #{tpu_custom_call.1} parent=5 // pred_fallthru
        _
      %p240 = scmp.le.s32.totalorder 2, %s15
      // Predicated region
      $region41: #{tpu_custom_call.1} parent=5 // pred_check
        %p241 = pneg %p240
      $region42: #{tpu_custom_call.1} parent=5 // pred_check_branch
        %243 = sbr.rel (%p241) target = $region44
      $region43: #{tpu_custom_call.1} parent=5 // pred_region
        %s244 = ssub.s32 %s15, 2
        // Predicated region
        $region45: #{tpu_custom_call.1} parent=43 // pred_check
          %p245 = pneg %p125
        $region46: #{tpu_custom_call.1} parent=43 // pred_check_branch
          %247 = sbr.rel (%p245) target = $region48
        $region47: #{tpu_custom_call.1} parent=43 // pred_region
          %s248 = sand.u32 %s110, 1
          %s249 = scalar_lea.sflag [#allocation4], %s248
          %s250 = sand.u32 %s110, 1
          %s251 = smul.addr %s250, 8
          %s252 = scalar_lea.vmem [#allocation7], %s251
          %254 = dma.done %s249, 128
        $region48: #{tpu_custom_call.1} parent=43 // pred_fallthru
          _
      $region44: #{tpu_custom_call.1} parent=5 // pred_fallthru
        _
    $region6: #{tpu_custom_call.1} parent=1 // loop_footer
      %s19 = sadd.s32 1, %s15
    $region7: #{tpu_custom_call.1} parent=1 // loop_footer_branch
      %14 = sbr.rel target = $region3
    $region8: #{tpu_custom_call.1} parent=1 // loop_exit
      _
    %255 = vsyncpa [#allocation3], 1
    %s256 = scalar_lea.sflag [#allocation3], 1
    %257 = vsyncpa %s256, 1
    %258 = vsyncpa [#allocation6], 1
    %259 = vsyncpa [#allocation4], 1
    %s260 = scalar_lea.sflag [#allocation4], 1
    %261 = vsyncpa %s260, 1

</llo_original>
